<compile_context>
chip_gen: v5e
topology: v5e:2x2
jax: 0.10.0
libtpu: 0.0.40
codegen_flags: <defaults>
</compile_context>

<pallas_src>
import functools

import jax
import jax.numpy as jnp
import numpy as np
from jax.experimental import pallas as pl
from jax.experimental.pallas import tpu as pltpu

EPS = 1e-5
LANES = 128                       # output channels padded to a multiple of 128 lanes
MXU_DTYPE = jnp.bfloat16          # MXU operands + stored activations; math stays f32
VMEM_LIMIT = 48 * 1024 * 1024     # explicit scoped-VMEM budget (headroom on v7x 64 MiB)


def _round_up(x, m):
    return (x + m - 1) // m * m


def _pick_row_tile(nh_groups, w_pad, target_rows):
    """Largest divisor d of nh_groups with d*w_pad a multiple of 16 and <= target_rows."""
    best = None
    for d in range(1, nh_groups + 1):
        if nh_groups % d:
            continue
        rows = d * w_pad
        if rows % 16 == 0 and rows <= target_rows:
            best = d
    return best if best is not None else nh_groups


# --------------------------------------------------------------------------------------
# Pass 1 (calls A and B): 3x3 conv (one MXU matmul + sublane rolls) + BN batch stats.
# Call B additionally applies the previous layer's BN scale/shift + ReLU to its input.
# --------------------------------------------------------------------------------------
def _conv_stats_body(x, w, mask, out_ref, s_ref, q_ref, *, coutp, shift_base):
    rows = out_ref.shape[0]
    # Contraction over (kh, cin).  The three kw taps come out as three lane groups of
    # width `coutp`; they are realigned to their output columns with cheap XLU rolls.
    p = jnp.dot(x, w, preferred_element_type=jnp.float32)
    acc = None
    for kw in range(3):
        part = p[:, kw * coutp:(kw + 1) * coutp]
        s = (shift_base - kw) % rows           # column alignment of kw-tap -> output
        if s:
            part = pltpu.roll(part, shift=s, axis=0)
        acc = part if acc is None else acc + part
    # Zero the two W-padding slots of every image row: keeps roll wrap-around garbage
    # out of both the stored activations and the batch statistics.
    acc = acc * mask
    out_ref[...] = acc.astype(out_ref.dtype)
    s_ref[...] += jnp.sum(acc, axis=0, keepdims=True)
    q_ref[...] += jnp.sum(acc * acc, axis=0, keepdims=True)


def _conv3x3_stats_kernel(x_ref, w_ref, mask_ref, out_ref, s_ref, q_ref,
                          *, coutp, shift_base):
    @pl.when(pl.program_id(0) == 0)
    def _init():
        s_ref[...] = jnp.zeros_like(s_ref)
        q_ref[...] = jnp.zeros_like(q_ref)

    _conv_stats_body(x_ref[...], w_ref[...], mask_ref[...], out_ref, s_ref, q_ref,
                     coutp=coutp, shift_base=shift_base)


def _affine_relu_conv3x3_stats_kernel(x_ref, w_ref, mask_ref, scale_ref, shift_ref,
                                      out_ref, s_ref, q_ref, *, coutp, shift_base):
    @pl.when(pl.program_id(0) == 0)
    def _init():
        s_ref[...] = jnp.zeros_like(s_ref)
        q_ref[...] = jnp.zeros_like(q_ref)

    # Fused BN(previous layer) + ReLU.  Padding slots of the input were poisoned with
    # -shift/scale in the wrapper, so they land back on ~0 here (true zero padding).
    xin = jnp.maximum(
        x_ref[...].astype(jnp.float32) * scale_ref[...] + shift_ref[...], 0.0)
    _conv_stats_body(xin.astype(MXU_DTYPE), w_ref[...], mask_ref[...],
                     out_ref, s_ref, q_ref, coutp=coutp, shift_base=shift_base)


def _conv3x3_with_stats(x3, w_full, mask, *, coutp, tile_rows, shift_base,
                        scale3=None, shift3=None):
    rows_total, kdim = x3.shape
    grid = (rows_total // tile_rows,)
    in_specs = [
        pl.BlockSpec((tile_rows, kdim), lambda i: (i, 0)),
        pl.BlockSpec((kdim, 3 * coutp), lambda i: (0, 0)),
        pl.BlockSpec((tile_rows, 1), lambda i: (i, 0)),
    ]
    args = [x3, w_full, mask]
    if scale3 is None:
        kernel = functools.partial(_conv3x3_stats_kernel,
                                   coutp=coutp, shift_base=shift_base)
    else:
        kernel = functools.partial(_affine_relu_conv3x3_stats_kernel,
                                   coutp=coutp, shift_base=shift_base)
        in_specs += [pl.BlockSpec((1, kdim), lambda i: (0, 0)),
                     pl.BlockSpec((1, kdim), lambda i: (0, 0))]
        args += [scale3, shift3]
    cost = pl.CostEstimate(
        flops=int(2 * rows_total * kdim * 3 * coutp + 6 * rows_total * kdim),
        transcendentals=0,
        bytes_accessed=int(x3.size * x3.dtype.itemsize
                           + w_full.size * w_full.dtype.itemsize
                           + rows_total * coutp * 2),
    )
    return pl.pallas_call(
        kernel,
        out_shape=(
            jax.ShapeDtypeStruct((rows_total, coutp), MXU_DTYPE),   # un-normalized conv
            jax.ShapeDtypeStruct((1, coutp), jnp.float32),          # per-channel sum
            jax.ShapeDtypeStruct((1, coutp), jnp.float32),          # per-channel sum sq
        ),
        grid=grid,
        in_specs=in_specs,
        out_specs=(
            pl.BlockSpec((tile_rows, coutp), lambda i: (i, 0)),
            pl.BlockSpec((1, coutp), lambda i: (0, 0)),   # resident accumulator
            pl.BlockSpec((1, coutp), lambda i: (0, 0)),   # resident accumulator
        ),
        compiler_params=pltpu.CompilerParams(
            dimension_semantics=("arbitrary",),   # stats accumulate across the row axis
            vmem_limit_bytes=VMEM_LIMIT,
        ),
        cost_estimate=cost,
    )(*args)


# --------------------------------------------------------------------------------------
# Pass 2 (call C): BN2 scale/shift + fused residual 1x1 projection + add + final ReLU
# --------------------------------------------------------------------------------------
def _bn_res_act_kernel(conv_ref, scale_ref, shift_ref, xres_ref, wres_ref, out_ref):
    y = conv_ref[...].astype(jnp.float32) * scale_ref[...] + shift_ref[...]
    y = y + jnp.dot(xres_ref[...], wres_ref[...], preferred_element_type=jnp.float32)
    out_ref[...] = jnp.maximum(y, 0.0).astype(out_ref.dtype)


def _bn_res_act(conv, scale, shift, xres, wres, *, tile_rows, out_dtype):
    rows_total, coutp = conv.shape
    cin = xres.shape[1]
    grid = (rows_total // tile_rows,)
    cost = pl.CostEstimate(
        flops=int(2 * rows_total * cin * coutp + 4 * rows_total * coutp),
        transcendentals=0,
        bytes_accessed=int(conv.size * 2 + xres.size * 2 + rows_total * coutp * 4),
    )
    return pl.pallas_call(
        _bn_res_act_kernel,
        out_shape=jax.ShapeDtypeStruct((rows_total, coutp), out_dtype),
        grid=grid,
        in_specs=[
            pl.BlockSpec((tile_rows, coutp), lambda i: (i, 0)),
            pl.BlockSpec((1, coutp), lambda i: (0, 0)),
            pl.BlockSpec((1, coutp), lambda i: (0, 0)),
            pl.BlockSpec((tile_rows, cin), lambda i: (i, 0)),
            pl.BlockSpec((cin, coutp), lambda i: (0, 0)),
        ],
        out_specs=pl.BlockSpec((tile_rows, coutp), lambda i: (i, 0)),
        compiler_params=pltpu.CompilerParams(
            dimension_semantics=("parallel",),    # pure per-tile pass (megacore-shardable)
            vmem_limit_bytes=VMEM_LIMIT,
        ),
        cost_estimate=cost,
    )(conv, scale, shift, xres, wres)


# --------------------------------------------------------------------------------------
# Wrapper-side layout glue (pure reshape / pad / transpose / select, done by XLA)
# --------------------------------------------------------------------------------------
def _h_window_rows(x_nhwc):
    """(N,H,W,C) -> (N*H*(W+2), 3*C): zero-pad H and W by 1 and stack the three
    kh-shifted rows along the channel axis (3x activation bytes, not 9x im2col)."""
    n, h, w, c = x_nhwc.shape
    xp = jnp.pad(x_nhwc, ((0, 0), (1, 1), (1, 1), (0, 0)))
    x3 = jnp.concatenate([xp[:, k:k + h, :, :] for k in range(3)], axis=-1)
    return x3.reshape(n * h * (w + 2), 3 * c)


def _conv3x3_weight(w_oihw, coutp):
    """OIHW -> (3*Cin, 3*Coutp), rows ordered (kh, cin), cols ordered (kw, cout)."""
    cout, cin = w_oihw.shape[0], w_oihw.shape[1]
    wt = jnp.transpose(w_oihw, (2, 1, 3, 0))                  # (kh, cin, kw, cout)
    wt = jnp.pad(wt, ((0, 0), (0, 0), (0, 0), (0, coutp - cout)))
    return wt.reshape(3 * cin, 3 * coutp)


def _valid_mask(n, h, w):
    m = jnp.broadcast_to(jnp.arange(w + 2) < w, (n * h, w + 2)).astype(jnp.float32)
    return m.reshape(n * h * (w + 2), 1)


def _bn_scale_shift(s, q, gamma, beta, count, coutp):
    """Fold training-mode BN (biased variance, eps=1e-5) into per-channel scale/shift."""
    cout = gamma.shape[0]
    g = jnp.pad(gamma.astype(jnp.float32), (0, coutp - cout), constant_values=1.0)
    b = jnp.pad(beta.astype(jnp.float32), (0, coutp - cout))
    mean = s / count
    var = jnp.maximum(q / count - mean * mean, 0.0)
    scale = g.reshape(1, coutp) * jax.lax.rsqrt(var + EPS)
    shift = b.reshape(1, coutp) - mean * scale
    return scale, shift


def make_cell_v1_forward(x_nchw, params, *, stack, resblock, strides=1,
                         target_tile_rows=1024):
    """Forward pass of make_cell_v1 (r1 -> r2, residual branch, add, ReLU)."""
    # TODO(synk): strides != 1 (spatial downsampling in r1/r3) is not implemented here.
    assert strides == 1
    n, cin, h, w = x_nchw.shape
    cout = params["w1"].shape[0]
    coutp = _round_up(cout, LANES)
    w_pad = w + 2
    rows_total = n * h * w_pad
    tile_rows = _pick_row_tile(n * h, w_pad, target_tile_rows) * w_pad
    count = float(n * h * w)

    x_bf = jnp.transpose(x_nchw, (0, 2, 3, 1)).astype(MXU_DTYPE)   # (N,H,W,Cin) bf16
    mask = _valid_mask(n, h, w)

    # ---- call A: conv1 3x3 + BN1 batch statistics ---------------------------------
    # (conv bias `bias1` is exactly cancelled by the BN mean subtraction -> dropped)
    conv1, s1, q1 = _conv3x3_with_stats(
        _h_window_rows(x_bf),
        _conv3x3_weight(params["w1"], coutp).astype(MXU_DTYPE),
        mask, coutp=coutp, tile_rows=tile_rows, shift_base=0)
    sc1, sh1 = _bn_scale_shift(s1, q1, params["gamma1"], params["beta1"], count, coutp)

    # ---- build conv2 input from RAW conv1 output; BN1 + ReLU are fused into call B.
    # Padding slots are "poisoned" with -shift1/scale1 so the in-kernel affine + ReLU
    # maps them to ~0 (== true zero padding of ReLU(BN(conv1))). --------------------
    sc1c, sh1c = sc1[:, :cout], sh1[:, :cout]
    safe = jnp.where(jnp.abs(sc1c) < 1e-12, 1e-12, sc1c)
    poison = (-sh1c / safe)[0].astype(MXU_DTYPE)                       # (cout,)
    c1 = conv1.reshape(n, h, w_pad, coutp)[..., :cout]                 # W-pad cols are 0
    col_valid = (jnp.arange(w_pad) < w)[None, None, :, None]
    c1 = jnp.where(col_valid, c1, poison)                              # poison W padding
    prow = jnp.broadcast_to(poison, (n, 1, w_pad, cout)).astype(MXU_DTYPE)
    c1h = jnp.concatenate([prow, c1, prow], axis=1)                    # poison H padding
    x3b = jnp.concatenate([c1h[:, k:k + h] for k in range(3)],
                          axis=-1).reshape(rows_total, 3 * cout)
    scale3 = jnp.tile(sc1c, (1, 3))
    shift3 = jnp.tile(sh1c, (1, 3))

    # ---- call B: fused BN1/ReLU + conv2 3x3 + BN2 batch statistics -----------------
    conv2, s2, q2 = _conv3x3_with_stats(
        x3b, _conv3x3_weight(params["w2"], coutp).astype(MXU_DTYPE),
        mask, coutp=coutp, tile_rows=tile_rows, shift_base=1,
        scale3=scale3, shift3=shift3)
    sc2, sh2 = _bn_scale_shift(s2, q2, params["gamma2"], params["beta2"], count, coutp)

    # ---- call C: BN2 apply + residual 1x1 conv + add + final ReLU ------------------
    if resblock == 0 and stack > 0:
        wres = params["w3"][:, :, 0, 0].T            # (cin, cout) 1x1-conv projection
        bres = params["bias3"].astype(jnp.float32)
    else:
        # identity shortcut (requires cin == cout); reuse the projection kernel with I
        wres = jnp.eye(cout, dtype=jnp.float32)
        bres = jnp.zeros((cout,), jnp.float32)
    wres = jnp.pad(wres, ((0, 0), (0, coutp - cout))).astype(MXU_DTYPE)
    sh2 = sh2 + jnp.pad(bres, (0, coutp - cout)).reshape(1, coutp)   # fold proj bias
    xres = jnp.pad(x_bf, ((0, 0), (0, 0), (0, 2), (0, 0))).reshape(rows_total, cin)

    out = _bn_res_act(conv2, sc2, sh2, xres, wres,
                      tile_rows=tile_rows, out_dtype=jnp.float32)
    out = out.reshape(n, h, w_pad, coutp)[:, :, :w, :cout]
    return jnp.transpose(out, (0, 3, 1, 2))


# --------------------------------------------------------------------------------------
# Pure-JAX f32 reference with the exact PyTorch module semantics
# --------------------------------------------------------------------------------------
def reference_forward(x, params, *, stack, resblock):
    def conv3x3(v, wt, b):
        y = jax.lax.conv_general_dilated(v, wt, (1, 1), "SAME",
                                         dimension_numbers=("NCHW", "OIHW", "NCHW"))
        return y + b[None, :, None, None]

    def bn_train(y, gamma, beta):
        mean = jnp.mean(y, axis=(0, 2, 3), keepdims=True)
        var = jnp.mean((y - mean) ** 2, axis=(0, 2, 3), keepdims=True)
        return ((y - mean) * jax.lax.rsqrt(var + EPS)
                * gamma[None, :, None, None] + beta[None, :, None, None])

    y = jnp.maximum(bn_train(conv3x3(x, params["w1"], params["bias1"]),
                             params["gamma1"], params["beta1"]), 0.0)
    y = bn_train(conv3x3(y, params["w2"], params["bias2"]),
                 params["gamma2"], params["beta2"])
    if resblock == 0 and stack > 0:
        xs = jax.lax.conv_general_dilated(x, params["w3"], (1, 1), "VALID",
                                          dimension_numbers=("NCHW", "OIHW", "NCHW"))
        xs = xs + params["bias3"][None, :, None, None]
    else:
        xs = x
    return jnp.maximum(xs + y, 0.0)


if __name__ == "__main__":
    # make_cell_v1(stack=1, resblock=0, strides=1, in_filters=4, out_filters=16)
    # on a small (2, 4, 16, 16) input.
    N, CIN, H, W = 2, 4, 16, 16
    COUT = 16
    STACK, RESBLOCK = 1, 0

    ks = jax.random.split(jax.random.PRNGKey(0), 11)
    params = {
        "w1": jax.random.normal(ks[0], (COUT, CIN, 3, 3), jnp.float32) * 0.1,
        "bias1": jax.random.normal(ks[1], (COUT,), jnp.float32) * 0.1,
        "gamma1": 1.0 + 0.1 * jax.random.normal(ks[2], (COUT,), jnp.float32),
        "beta1": 0.1 * jax.random.normal(ks[3], (COUT,), jnp.float32),
        "w2": jax.random.normal(ks[4], (COUT, COUT, 3, 3), jnp.float32) * 0.05,
        "bias2": jax.random.normal(ks[5], (COUT,), jnp.float32) * 0.1,
        "gamma2": 1.0 + 0.1 * jax.random.normal(ks[6], (COUT,), jnp.float32),
        "beta2": 0.1 * jax.random.normal(ks[7], (COUT,), jnp.float32),
        "w3": jax.random.normal(ks[8], (COUT, CIN, 1, 1), jnp.float32) * 0.3,
        "bias3": jax.random.normal(ks[9], (COUT,), jnp.float32) * 0.1,
    }
    x = jax.random.normal(ks[10], (N, CIN, H, W), jnp.float32)

    # target_tile_rows is lowered from its 1024-row default so this tiny demo still
    # exercises a multi-step grid (4 row tiles) and the cross-tile stats accumulators.
    out = jax.block_until_ready(
        make_cell_v1_forward(x, params, stack=STACK, resblock=RESBLOCK,
                             target_tile_rows=256))
    ref = jax.block_until_ready(
        reference_forward(x, params, stack=STACK, resblock=RESBLOCK))

    assert out.shape == (N, COUT, H, W) and out.dtype == jnp.float32
    # bf16 MXU operands / bf16 intermediate activations (f32 accumulation and f32 BN
    # math) vs. a pure-f32 reference: the tolerance covers bf16 rounding but is far
    # below any structural error (O(1)).
    np.testing.assert_allclose(np.asarray(out), np.asarray(ref), atol=5e-2, rtol=5e-2)
    print("KERNEL_OK")
</pallas_src>

<mosaic_0001>
module attributes {stable_mosaic.version = 11 : i64} {
  func.func @_conv3x3_stats_kernel(%arg0: i32, %arg1: memref<144x12xbf16, #tpu.memory_space<vmem>>, %arg2: memref<12x384xbf16, #tpu.memory_space<vmem>>, %arg3: memref<144x1xf32, #tpu.memory_space<vmem>>, %arg4: memref<144x128xbf16, #tpu.memory_space<vmem>>, %arg5: memref<1x128xf32, #tpu.memory_space<vmem>>, %arg6: memref<1x128xf32, #tpu.memory_space<vmem>>) attributes {dimension_semantics = [#tpu.dimension_semantics<arbitrary>], iteration_bounds = array<i64: 4>, scalar_prefetch = 0 : i64, scratch_operands = 0 : i64, tpu.core_type = #tpu.core_type<tc>, window_params = [{transform_indices = @transform_0, window_bounds = array<i64: 144, 12>}, {pipeline_mode = #tpu.pipeline_mode<synchronous>, transform_indices = @transform_1, window_bounds = array<i64: 12, 384>}, {transform_indices = @transform_2, window_bounds = array<i64: 144, 1>}, {transform_indices = @transform_3, window_bounds = array<i64: 144, 128>}, {pipeline_mode = #tpu.pipeline_mode<synchronous>, transform_indices = @transform_4, window_bounds = array<i64: 1, 128>}, {pipeline_mode = #tpu.pipeline_mode<synchronous>, transform_indices = @transform_5, window_bounds = array<i64: 1, 128>}]} {
    %c0_i32 = arith.constant 0 : i32
    %0 = arith.cmpi eq, %arg0, %c0_i32 : i32
    %1 = arith.extui %0 : i1 to i32
    %c0_i32_0 = arith.constant 0 : i32
    %2 = arith.cmpi ne, %1, %c0_i32_0 : i32
    scf.if %2 {
      %cst_18 = arith.constant 0.000000e+00 : f32
      %29 = vector.broadcast %cst_18 : f32 to vector<1x128xf32>
      %c0_19 = arith.constant 0 : index
      %c0_20 = arith.constant 0 : index
      %30 = vector.load %arg5[%c0_19, %c0_20] : memref<1x128xf32, #tpu.memory_space<vmem>>, vector<1x128xf32>
      tpu.vector_store %arg5[%c0_19, %c0_20], %29 {strides = array<i32>} : memref<1x128xf32, #tpu.memory_space<vmem>>, vector<1x128xf32>,
      %cst_21 = arith.constant 0.000000e+00 : f32
      %31 = vector.broadcast %cst_21 : f32 to vector<1x128xf32>
      %c0_22 = arith.constant 0 : index
      %c0_23 = arith.constant 0 : index
      %32 = vector.load %arg6[%c0_22, %c0_23] : memref<1x128xf32, #tpu.memory_space<vmem>>, vector<1x128xf32>
      tpu.vector_store %arg6[%c0_22, %c0_23], %31 {strides = array<i32>} : memref<1x128xf32, #tpu.memory_space<vmem>>, vector<1x128xf32>,
    } else {
    }
    %c0 = arith.constant 0 : index
    %c0_1 = arith.constant 0 : index
    %3 = vector.load %arg1[%c0, %c0_1] : memref<144x12xbf16, #tpu.memory_space<vmem>>, vector<144x12xbf16>
    %c0_2 = arith.constant 0 : index
    %c0_3 = arith.constant 0 : index
    %4 = vector.load %arg2[%c0_2, %c0_3] : memref<12x384xbf16, #tpu.memory_space<vmem>>, vector<12x384xbf16>
    %c0_4 = arith.constant 0 : index
    %c0_5 = arith.constant 0 : index
    %5 = vector.load %arg3[%c0_4, %c0_5] : memref<144x1xf32, #tpu.memory_space<vmem>>, vector<144x1xf32>
    %cst = arith.constant dense<0.000000e+00> : vector<144x384xf32>
    %6 = tpu.matmul %3, %4, %cst {dimension_numbers = #tpu.dot_dimension_numbers<[1], [0], [0], [1], [0, 0, 1, 1], [], []>} : vector<144x12xbf16>, vector<12x384xbf16>, vector<144x384xf32> -> vector<144x384xf32>
    %7 = vector.extract_strided_slice %6 {offsets = [0, 0], sizes = [144, 128], strides = [1, 1]} : vector<144x384xf32> to vector<144x128xf32>
    %8 = vector.extract_strided_slice %6 {offsets = [0, 128], sizes = [144, 128], strides = [1, 1]} : vector<144x384xf32> to vector<144x128xf32>
    %c143_i32 = arith.constant 143 : i32
    %9 = tpu.dynamic_rotate %8 by %c143_i32 dim 0 : vector<144x128xf32>, i32 -> vector<144x128xf32>
    %10 = arith.addf %7, %9 : vector<144x128xf32>
    %11 = vector.extract_strided_slice %6 {offsets = [0, 256], sizes = [144, 128], strides = [1, 1]} : vector<144x384xf32> to vector<144x128xf32>
    %c142_i32 = arith.constant 142 : i32
    %12 = tpu.dynamic_rotate %11 by %c142_i32 dim 0 : vector<144x128xf32>, i32 -> vector<144x128xf32>
    %13 = arith.addf %10, %12 : vector<144x128xf32>
    %14 = vector.broadcast %5 : vector<144x1xf32> to vector<144x128xf32>
    %15 = arith.mulf %13, %14 : vector<144x128xf32>
    %16 = arith.truncf %15 : vector<144x128xf32> to vector<144x128xbf16>
    %c0_6 = arith.constant 0 : index
    %c0_7 = arith.constant 0 : index
    %17 = vector.load %arg4[%c0_6, %c0_7] : memref<144x128xbf16, #tpu.memory_space<vmem>>, vector<144x128xbf16>
    tpu.vector_store %arg4[%c0_6, %c0_7], %16 {strides = array<i32>} : memref<144x128xbf16, #tpu.memory_space<vmem>>, vector<144x128xbf16>,
    %c0_8 = arith.constant 0 : index
    %c0_9 = arith.constant 0 : index
    %18 = vector.load %arg5[%c0_8, %c0_9] : memref<1x128xf32, #tpu.memory_space<vmem>>, vector<1x128xf32>
    %cst_10 = arith.constant dense<0.000000e+00> : vector<128xf32>
    %19 = vector.multi_reduction <add>, %15, %cst_10 [0] : vector<144x128xf32> to vector<128xf32>
    %20 = vector.shape_cast %19 : vector<128xf32> to vector<1x128xf32>
    %21 = arith.addf %18, %20 : vector<1x128xf32>
    %c0_11 = arith.constant 0 : index
    %c0_12 = arith.constant 0 : index
    %22 = vector.load %arg5[%c0_11, %c0_12] : memref<1x128xf32, #tpu.memory_space<vmem>>, vector<1x128xf32>
    tpu.vector_store %arg5[%c0_11, %c0_12], %21 {strides = array<i32>} : memref<1x128xf32, #tpu.memory_space<vmem>>, vector<1x128xf32>,
    %c0_13 = arith.constant 0 : index
    %c0_14 = arith.constant 0 : index
    %23 = vector.load %arg6[%c0_13, %c0_14] : memref<1x128xf32, #tpu.memory_space<vmem>>, vector<1x128xf32>
    %24 = arith.mulf %15, %15 : vector<144x128xf32>
    %cst_15 = arith.constant dense<0.000000e+00> : vector<128xf32>
    %25 = vector.multi_reduction <add>, %24, %cst_15 [0] : vector<144x128xf32> to vector<128xf32>
    %26 = vector.shape_cast %25 : vector<128xf32> to vector<1x128xf32>
    %27 = arith.addf %23, %26 : vector<1x128xf32>
    %c0_16 = arith.constant 0 : index
    %c0_17 = arith.constant 0 : index
    %28 = vector.load %arg6[%c0_16, %c0_17] : memref<1x128xf32, #tpu.memory_space<vmem>>, vector<1x128xf32>
    tpu.vector_store %arg6[%c0_16, %c0_17], %27 {strides = array<i32>} : memref<1x128xf32, #tpu.memory_space<vmem>>, vector<1x128xf32>,
    return
  }
  func.func @transform_0(%arg0: i32) -> (i32, i32) {
    %c0_i32 = arith.constant 0 : i32
    %c0_i32_0 = arith.constant 0 : i32
    return %arg0, %c0_i32 : i32, i32
  }
  func.func @transform_1(%arg0: i32) -> (i32, i32) {
    %c0_i32 = arith.constant 0 : i32
    %c0_i32_0 = arith.constant 0 : i32
    %c0_i32_1 = arith.constant 0 : i32
    return %c0_i32, %c0_i32_0 : i32, i32
  }
  func.func @transform_2(%arg0: i32) -> (i32, i32) {
    %c0_i32 = arith.constant 0 : i32
    %c0_i32_0 = arith.constant 0 : i32
    return %arg0, %c0_i32 : i32, i32
  }
  func.func @transform_3(%arg0: i32) -> (i32, i32) {
    %c0_i32 = arith.constant 0 : i32
    %c0_i32_0 = arith.constant 0 : i32
    return %arg0, %c0_i32 : i32, i32
  }
  func.func @transform_4(%arg0: i32) -> (i32, i32) {
    %c0_i32 = arith.constant 0 : i32
    %c0_i32_0 = arith.constant 0 : i32
    %c0_i32_1 = arith.constant 0 : i32
    return %c0_i32, %c0_i32_0 : i32, i32
  }
  func.func @transform_5(%arg0: i32) -> (i32, i32) {
    %c0_i32 = arith.constant 0 : i32
    %c0_i32_0 = arith.constant 0 : i32
    %c0_i32_1 = arith.constant 0 : i32
    return %c0_i32, %c0_i32_0 : i32, i32
  }
}

</mosaic_0001>

<llo_original>
// kernel: tpu_custom_call.1
$region0: #{tpu_custom_call.1}
  #allocation0 [shape = 'u32[]', space=smem, size = 0x4, offset = 0x4, fixed_abs, tag = 'smem constant byte address 0x4 - core index']
  #allocation1 [shape = 'u32[72,128]{1,0:T(1,128)}', space=vmem, size = 0x9000, scoped, tag = 'internal scratch']
  %s0 = inlined_call_operand.vmem [shape: bf16[576,12], index: 0, kind: input, shape index: {}]
  %s1 = inlined_call_operand.vmem [shape: bf16[12,384], index: 1, kind: input, shape index: {}]
  %s2 = inlined_call_operand.vmem [shape: f32[576,1], index: 2, kind: input, shape index: {}]
  %s3 = inlined_call_operand.hbm [shape: bf16[576,128], index: 3, kind: output, shape index: {0}]
  %s4 = inlined_call_operand.hbm [shape: f32[1,128], index: 4, kind: output, shape index: {1}]
  %s5 = inlined_call_operand.hbm [shape: f32[1,128], index: 5, kind: output, shape index: {2}]
  %6 = xla_tuple %s3, %s4, %s5
  %s7 = sld [smem:[#allocation0]]
  $region65: #{tpu_custom_call.1} parent=0
    _
  %s9 = ssub.s32 1, %s7
  %s10 = scalar_select 0, %s9, %s7
  $region1: #{tpu_custom_call.1} parent=0
    #allocation2 [shape = 'u8[73728]{0}', space=vmem, size = 0x12000, scoped, tag = 'output window, operand 0']
    #allocation3 [shape = 's32[2]{0}', space=sflag, size = 0x8, scoped, tag = 'scoped memory for tpu_custom_call.1']
    #allocation4 [shape = 'u8[512]{0}', space=vmem, size = 0x400, scoped, tag = 'output window, operand 1, single buffered']
    #allocation5 [shape = 's32[1]{0}', space=sflag, size = 0x4, scoped, tag = 'scoped memory for tpu_custom_call.1']
    #allocation6 [shape = 'u8[512]{0}', space=vmem, size = 0x400, scoped, tag = 'output window, operand 2, single buffered']
    %11 = vsyncpa [#allocation3], 0
    %s12 = scalar_lea.sflag [#allocation3], 1
    %13 = vsyncpa %s12, 0
    %14 = vsyncpa [#allocation5], 0
    loop: start=0, step=1, limit=6
    $region2: #{tpu_custom_call.1} parent=1 // loop_pre_header
      _
    $region3: #{tpu_custom_call.1} parent=1 // loop_header
      %s16 = sphi 0, %s20
      %p17 = scmp.ge.s32.totalorder %s16, 6
      %s26 = sphi 0, %s28
      %s29 = sphi 0, %s26
      %s30 = sphi 0, %s29
      %s46 = sphi 0, %s30
      %s50 = sphi 0, %s50
      %s52 = sphi 0, %s50
      %s53 = sphi 0, %s52
      %s67 = sphi 0, %s53
      %s73 = sphi 0, %s75
      %s76 = sphi 0, %s73
      %s77 = sphi 0, %s76
      %s93 = sphi 0, %s77
      %s99 = sphi 0, %s101
      %s102 = sphi 0, %s99
      %s103 = sphi 0, %s102
      %s119 = sphi 0, %s103
      %s123 = sphi 0, %s123
      %s125 = sphi 0, %s123
      %s126 = sphi 0, %s125
      %s140 = sphi 0, %s126
      %s144 = sphi 0, %s144
      %s146 = sphi 0, %s144
      %s147 = sphi 0, %s146
      %s161 = sphi 0, %s147
    $region4: #{tpu_custom_call.1} parent=1 // loop_header_branch
      %19 = sbr.rel (%p17) target = $region8
    $region5: #{tpu_custom_call.1} parent=1 // loop_body
      %s21 = ssub.s32 %s16, 1
      %s22 = ssub.s32 %s16, 2
      %s23 = sadd.s32 %s16, 1
      %s24 = ssub.s32 %s16, %s23
      %p25 = scmp.eq.s32.totalorder %s24, 0
      %s27 = sadd.s32 %s26, 1
      %s28 = scalar_select %p25, %s26, %s27
      %p31 = pneg %p25
      %p32 = scmp.eq.s32.totalorder %s16, 3
      %p33 = por %p31, %p32
      %p34 = scmp.ne.s32.totalorder %s26, %s29
      %p35 = scmp.eq.s32.totalorder %s16, 0
      %p36 = por %p34, %p35
      %p37 = scmp.ne.s32.totalorder %s26, %s29
      %p38 = scmp.eq.s32.totalorder %s21, 3
      %p39 = por %p37, %p38
      %p40 = scmp.ne.s32.totalorder %s29, %s30
      %p41 = scmp.eq.s32.totalorder %s21, 0
      %p42 = por %p40, %p41
      %p43 = scmp.ne.s32.totalorder %s29, %s30
      %p44 = scmp.eq.s32.totalorder %s22, 3
      %p45 = por %p43, %p44
      %p47 = scmp.ne.s32.totalorder %s30, %s46
      %p48 = scmp.eq.s32.totalorder %s22, 0
      %p49 = por %p47, %p48
      %s51 = sadd.s32 %s50, 1
      %p54 = scmp.eq.s32.totalorder %s16, 3
      %p55 = scmp.ne.s32.totalorder %s50, %s52
      %p56 = scmp.eq.s32.totalorder %s16, 0
      %p57 = por %p55, %p56
      %p58 = scmp.ne.s32.totalorder %s50, %s52
      %p59 = scmp.eq.s32.totalorder %s21, 3
      %p60 = por %p58, %p59
      %p61 = scmp.ne.s32.totalorder %s52, %s53
      %p62 = scmp.eq.s32.totalorder %s21, 0
      %p63 = por %p61, %p62
      %p64 = scmp.ne.s32.totalorder %s52, %s53
      %p65 = scmp.eq.s32.totalorder %s22, 3
      %p66 = por %p64, %p65
      %p68 = scmp.ne.s32.totalorder %s53, %s67
      %p69 = scmp.eq.s32.totalorder %s22, 0
      %p70 = por %p68, %p69
      %s71 = ssub.s32 %s16, %s23
      %p72 = scmp.eq.s32.totalorder %s71, 0
      %s74 = sadd.s32 %s73, 1
      %s75 = scalar_select %p72, %s73, %s74
      %p78 = pneg %p72
      %p79 = scmp.eq.s32.totalorder %s16, 3
      %p80 = por %p78, %p79
      %p81 = scmp.ne.s32.totalorder %s73, %s76
      %p82 = scmp.eq.s32.totalorder %s16, 0
      %p83 = por %p81, %p82
      %p84 = scmp.ne.s32.totalorder %s73, %s76
      %p85 = scmp.eq.s32.totalorder %s21, 3
      %p86 = por %p84, %p85
      %p87 = scmp.ne.s32.totalorder %s76, %s77
      %p88 = scmp.eq.s32.totalorder %s21, 0
      %p89 = por %p87, %p88
      %p90 = scmp.ne.s32.totalorder %s76, %s77
      %p91 = scmp.eq.s32.totalorder %s22, 3
      %p92 = por %p90, %p91
      %p94 = scmp.ne.s32.totalorder %s77, %s93
      %p95 = scmp.eq.s32.totalorder %s22, 0
      %p96 = por %p94, %p95
      %s97 = ssub.s32 %s16, %s23
      %p98 = scmp.eq.s32.totalorder %s97, 0
      %s100 = sadd.s32 %s99, 1
      %s101 = scalar_select %p98, %s99, %s100
      %p104 = pneg %p98
      %p105 = scmp.eq.s32.totalorder %s16, 3
      %p106 = por %p104, %p105
      %p107 = scmp.ne.s32.totalorder %s99, %s102
      %p108 = scmp.eq.s32.totalorder %s16, 0
      %p109 = por %p107, %p108
      %p110 = scmp.ne.s32.totalorder %s99, %s102
      %p111 = scmp.eq.s32.totalorder %s21, 3
      %p112 = por %p110, %p111
      %p113 = scmp.ne.s32.totalorder %s102, %s103
      %p114 = scmp.eq.s32.totalorder %s21, 0
      %p115 = por %p113, %p114
      %p116 = scmp.ne.s32.totalorder %s102, %s103
      %p117 = scmp.eq.s32.totalorder %s22, 3
      %p118 = por %p116, %p117
      %p120 = scmp.ne.s32.totalorder %s103, %s119
      %p121 = scmp.eq.s32.totalorder %s22, 0
      %p122 = por %p120, %p121
      %s124 = sadd.s32 %s123, 1
      %p127 = scmp.eq.s32.totalorder %s16, 3
      %p128 = scmp.ne.s32.totalorder %s123, %s125
      %p129 = scmp.eq.s32.totalorder %s16, 0
      %p130 = por %p128, %p129
      %p131 = scmp.ne.s32.totalorder %s123, %s125
      %p132 = scmp.eq.s32.totalorder %s21, 3
      %p133 = por %p131, %p132
      %p134 = scmp.ne.s32.totalorder %s125, %s126
      %p135 = scmp.eq.s32.totalorder %s21, 0
      %p136 = por %p134, %p135
      %p137 = scmp.ne.s32.totalorder %s125, %s126
      %p138 = scmp.eq.s32.totalorder %s22, 3
      %p139 = por %p137, %p138
      %p141 = scmp.ne.s32.totalorder %s126, %s140
      %p142 = scmp.eq.s32.totalorder %s22, 0
      %p143 = por %p141, %p142
      %s145 = sadd.s32 %s144, 1
      %p148 = scmp.eq.s32.totalorder %s16, 3
      %p149 = scmp.ne.s32.totalorder %s144, %s146
      %p150 = scmp.eq.s32.totalorder %s16, 0
      %p151 = por %p149, %p150
      %p152 = scmp.ne.s32.totalorder %s144, %s146
      %p153 = scmp.eq.s32.totalorder %s21, 3
      %p154 = por %p152, %p153
      %p155 = scmp.ne.s32.totalorder %s146, %s147
      %p156 = scmp.eq.s32.totalorder %s21, 0
      %p157 = por %p155, %p156
      %p158 = scmp.ne.s32.totalorder %s146, %s147
      %p159 = scmp.eq.s32.totalorder %s22, 3
      %p160 = por %p158, %p159
      %p162 = scmp.ne.s32.totalorder %s147, %s161
      %p163 = scmp.eq.s32.totalorder %s22, 0
      %p164 = por %p162, %p163
      %p165 = scmp.le.s32.totalorder 1, %s16
      %p166 = scmp.lt.s32.totalorder %s16, 5
      %p167 = pnand %p165, %p166
      %p168 = pneg %p167
      // Predicated region
      $region9: #{tpu_custom_call.1} parent=5 // pred_check
        _
      $region10: #{tpu_custom_call.1} parent=5 // pred_check_branch
        %170 = sbr.rel (%p167) target = $region12
      $region11: #{tpu_custom_call.1} parent=5 // pred_region
        %s171 = ssub.s32 %s16, 1
        // Predicated region
        $region13: #{tpu_custom_call.1} parent=11 // pred_check
          %p172 = pneg %p63
        $region14: #{tpu_custom_call.1} parent=11 // pred_check_branch
          %174 = sbr.rel (%p172) target = $region16
        $region15: #{tpu_custom_call.1} parent=11 // pred_region
          _
        $region16: #{tpu_custom_call.1} parent=11 // pred_fallthru
          _
      $region12: #{tpu_custom_call.1} parent=5 // pred_fallthru
        _
      %p175 = scmp.lt.s32.totalorder %s16, 4
      // Predicated region
      $region17: #{tpu_custom_call.1} parent=5 // pred_check
        %p176 = pneg %p175
      $region18: #{tpu_custom_call.1} parent=5 // pred_check_branch
        %178 = sbr.rel (%p176) target = $region20
      $region19: #{tpu_custom_call.1} parent=5 // pred_region
        // Predicated region
        $region21: #{tpu_custom_call.1} parent=19 // pred_check
          %p179 = pneg %p36
        $region22: #{tpu_custom_call.1} parent=19 // pred_check_branch
          %181 = sbr.rel (%p179) target = $region24
        $region23: #{tpu_custom_call.1} parent=19 // pred_region
          %s182 = smul.u32 18, %s16
          %p183 = scmp.lt.s32.totalorder %s182, 71
          %s184 = scalar_select %p183, %s182, 71
          %s185 = smul.addr %s184, 4
          %s186 = scalar_lea.vmem %s0, %s185
          %s187 = smul.u32 18, %s16
        $region24: #{tpu_custom_call.1} parent=19 // pred_fallthru
          _
        // Predicated region
        $region25: #{tpu_custom_call.1} parent=19 // pred_check
          %p188 = pneg %p83
        $region26: #{tpu_custom_call.1} parent=19 // pred_check_branch
          %190 = sbr.rel (%p188) target = $region28
        $region27: #{tpu_custom_call.1} parent=19 // pred_region
          %s191 = smul.u32 18, %s16
          %p192 = scmp.lt.s32.totalorder %s191, 71
          %s193 = scalar_select %p192, %s191, 71
          %s194 = smul.addr %s193, 8
          %s195 = scalar_lea.vmem %s2, %s194
          %s196 = smul.u32 18, %s16
        $region28: #{tpu_custom_call.1} parent=19 // pred_fallthru
          _
      $region20: #{tpu_custom_call.1} parent=5 // pred_fallthru
        _
      %p197 = scmp.le.s32.totalorder 1, %s16
      %p198 = scmp.lt.s32.totalorder %s16, 5
      %p199 = pnand %p197, %p198
      %p200 = pneg %p199
      // Predicated region
      $region29: #{tpu_custom_call.1} parent=5 // pred_check
        _
      $region30: #{tpu_custom_call.1} parent=5 // pred_check_branch
        %202 = sbr.rel (%p199) target = $region32
      $region31: #{tpu_custom_call.1} parent=5 // pred_region
        %s203 = ssub.s32 %s16, 1
        %s204 = smul.u32 18, %s21
        %p205 = scmp.lt.s32.totalorder %s204, 71
        %s206 = scalar_select %p205, %s204, 71
        %s207 = smul.addr %s206, 4
        %s208 = scalar_lea.vmem %s0, %s207
        %p209 = pneg %p42
        %p210 = pneg %p39
        %p211 = pneg %p63
        %p212 = pneg %p60
        %s213 = smul.u32 18, %s21
        %p214 = scmp.lt.s32.totalorder %s213, 71
        %s215 = scalar_select %p214, %s213, 71
        %s216 = smul.addr %s215, 8
        %s217 = scalar_lea.vmem %s2, %s216
        %p218 = pneg %p89
        %p219 = pneg %p86
        %p220 = pneg %p115
        %p221 = pneg %p112
        %s222 = sand.u32 %s102, 1
        %s223 = scalar_lea.sflag [#allocation3], %s222
        %s224 = sand.u32 %s102, 1
        %s225 = smul.addr %s224, 72
        %s226 = scalar_lea.vmem [#allocation2], %s225
        %p227 = pneg %p136
        %p228 = pneg %p133
        %p229 = pneg %p157
        %p230 = pneg %p154
        %s231 = smul.u32 18, %s21
        %p232 = scmp.lt.s32.totalorder %s231, 71
        %s233 = scalar_select %p232, %s231, 71
        %s234 = smul.addr %s233, 4
        %s235 = scalar_lea.vmem %s0, %s234
        %s236 = smul.u32 18, %s21
        %s237 = smul.u32 18, %s21
        %p238 = scmp.lt.s32.totalorder %s237, 71
        %s239 = scalar_select %p238, %s237, 71
        %s240 = smul.addr %s239, 8
        %s241 = scalar_lea.vmem %s2, %s240
        %s242 = smul.u32 18, %s21
        %s243 = smul.u32 18, %s21
        %p245 = scmp.eq.s32.totalorder %s21, 0
        // Predicated region
        $region33: #{tpu_custom_call.1} parent=31 // pred_check
          %p246 = pneg %p245
        $region34: #{tpu_custom_call.1} parent=31 // pred_check_branch
          %248 = sbr.rel (%p246) target = $region36
        $region35: #{tpu_custom_call.1} parent=31 // pred_region
          %249 = vst [vmem:[#allocation4] sm:$0x1] 0.0
          %250 = vst [vmem:[#allocation6] sm:$0x1] 0.0
        $region36: #{tpu_custom_call.1} parent=31 // pred_fallthru
          _
        %v251 = vld [vmem:[%s235] sm:$0xf]
        %v252 = vld [vmem:[%s235 + $0x4] sm:$0xf]
        %v253 = vld [vmem:[%s235 + $0x8] sm:$0xf]
        %v254 = vld [vmem:[%s235 + $0xc] sm:$0xf]
        %v255 = vld [vmem:[%s235 + $0x10] sm:$0xf]
        %v256 = vld [vmem:[%s235 + $0x14] sm:$0xf]
        %v257 = vld [vmem:[%s235 + $0x18] sm:$0xf]
        %v258 = vld [vmem:[%s235 + $0x1c] sm:$0xf]
        %v259 = vld [vmem:[%s235 + $0x20] sm:$0xf]
        %v260 = vld [vmem:[%s235 + $0x24] sm:$0xf]
        %v261 = vld [vmem:[%s235 + $0x28] sm:$0xf]
        %v262 = vld [vmem:[%s235 + $0x2c] sm:$0xf]
        %v263 = vld [vmem:[%s235 + $0x30] sm:$0xf]
        %v264 = vld [vmem:[%s235 + $0x34] sm:$0xf]
        %v265 = vld [vmem:[%s235 + $0x38] sm:$0xf]
        %v266 = vld [vmem:[%s235 + $0x3c] sm:$0xf]
        %v267 = vld [vmem:[%s235 + $0x40] sm:$0xf]
        %v268 = vld [vmem:[%s235 + $0x44] sm:$0xf]
        %v269 = vld [vmem:[%s1] sm:$0xff]
        %v270 = vld [vmem:[%s1 + $0x8] sm:$0xf]
        %v271 = vld [vmem:[%s1 + $0xc] sm:$0x33]
        %v272 = vld [vmem:[%s1 + $0x14] sm:$0x3]
        %v273 = vld [vmem:[%s241] sm:$0xff]
        %v274 = vld [vmem:[%s241 + $0x8] sm:$0xff]
        %v275 = vld [vmem:[%s241 + $0x10] sm:$0xff]
        %v276 = vld [vmem:[%s241 + $0x18] sm:$0xff]
        %v277 = vld [vmem:[%s241 + $0x20] sm:$0xff]
        %v278 = vld [vmem:[%s241 + $0x28] sm:$0xff]
        %v279 = vld [vmem:[%s241 + $0x30] sm:$0xff]
        %v280 = vld [vmem:[%s241 + $0x38] sm:$0xff]
        %v281 = vld [vmem:[%s241 + $0x40] sm:$0xff]
        %v282 = vld [vmem:[%s241 + $0x48] sm:$0xff]
        %v283 = vld [vmem:[%s241 + $0x50] sm:$0xff]
        %v284 = vld [vmem:[%s241 + $0x58] sm:$0xff]
        %v285 = vld [vmem:[%s241 + $0x60] sm:$0xff]
        %v286 = vld [vmem:[%s241 + $0x68] sm:$0xff]
        %v287 = vld [vmem:[%s241 + $0x70] sm:$0xff]
        %v288 = vld [vmem:[%s241 + $0x78] sm:$0xff]
        %v289 = vld [vmem:[%s241 + $0x80] sm:$0xff]
        %v290 = vld [vmem:[%s241 + $0x88] sm:$0xff]
        %v309 = vunpack.c.l.b16 %v251
        %v310 = vunpack.c.l.b16 %v252
        %v311 = vunpack.c.l.b16 %v253
        %v312 = vunpack.c.l.b16 %v254
        %v313 = vunpack.c.l.b16 %v255
        %v314 = vunpack.c.l.b16 %v256
        %v315 = vunpack.c.l.b16 %v257
        %v316 = vunpack.c.l.b16 %v258
        %v317 = vunpack.c.l.b16 %v259
        %v318 = vunpack.c.l.b16 %v260
        %v319 = vunpack.c.l.b16 %v261
        %v320 = vunpack.c.l.b16 %v262
        %v321 = vunpack.c.l.b16 %v263
        %v322 = vunpack.c.l.b16 %v264
        %v323 = vunpack.c.l.b16 %v265
        %v324 = vunpack.c.l.b16 %v266
        %v325 = vunpack.c.l.b16 %v267
        %v326 = vunpack.c.l.b16 %v268
        %v327 = vpack.c.b16 %v310, %v309
        %v328 = vpack.c.b16 %v312, %v311
        %v329 = vpack.c.b16 %v314, %v313
        %v330 = vpack.c.b16 %v316, %v315
        %v331 = vpack.c.b16 %v318, %v317
        %v332 = vpack.c.b16 %v320, %v319
        %v333 = vpack.c.b16 %v322, %v321
        %v334 = vpack.c.b16 %v324, %v323
        %v335 = vpack.c.b16 %v326, %v325
        %v340 = vunpack.c.l.b16 %v269
        %v341 = vunpack.c.h.b16 %v269
        %v342 = vunpack.c.l.b16 %v270
        %v343 = vunpack.c.l.b16 %v271
        %v344 = vunpack.c.h.b16 %v271
        %v345 = vunpack.c.l.b16 %v272
        %v346 = vpack.c.b16 %v343, %v340
        %v347 = vpack.c.b16 %v344, %v341
        %v348 = vpack.c.b16 %v345, %v342
        %vm349 = vcmask 97280
        %v351 = vsel %vm349, %v327, 0
        %v354 = vsel %vm349, %v328, 0
        %v357 = vsel %vm349, %v329, 0
        %v360 = vsel %vm349, %v330, 0
        %v363 = vsel %vm349, %v331, 0
        %v366 = vsel %vm349, %v332, 0
        %v369 = vsel %vm349, %v333, 0
        %v372 = vsel %vm349, %v334, 0
        %v375 = vsel %vm349, %v335, 0
        %vm377 = vcmask 1045504
        %v379 = vsel %vm377, %v346, 0
        %v382 = vsel %vm377, %v347, 0
        %v385 = vsel %vm377, %v348, 0
        %387 = vmatpush.bf16.msra.mxu0 0
        %388 = vmatpush.bf16.msra.mxu0 0
        %389 = vmatpush.bf16.msra.mxu0 0
        %390 = vmatpush.bf16.msra.mxu0 0
        %391 = vmatpush.bf16.msra.mxu0 0
        %392 = vmatpush.bf16.msra.mxu0 0
        %393 = vmatpush.bf16.msra.mxu0 0
        %394 = vmatpush.bf16.msra.mxu0 %v379
        %395 = vmatmul.bf16.gmra.mxu0 %v351
        %v396 = vpop.f32.mrf.mxu0
        %v397 = vadd.f32 0.0, %v396
        %v398 = vpop.f32.mrf.mxu0
        %v399 = vadd.f32 0.0, %v398
        %400 = vmatmul.bf16.gmra.mxu0 %v354
        %v401 = vpop.f32.mrf.mxu0
        %v402 = vadd.f32 0.0, %v401
        %v403 = vpop.f32.mrf.mxu0
        %v404 = vadd.f32 0.0, %v403
        %405 = vmatmul.bf16.gmra.mxu0 %v357
        %v406 = vpop.f32.mrf.mxu0
        %v407 = vadd.f32 0.0, %v406
        %v408 = vpop.f32.mrf.mxu0
        %v409 = vadd.f32 0.0, %v408
        %410 = vmatmul.bf16.gmra.mxu0 %v360
        %v411 = vpop.f32.mrf.mxu0
        %v412 = vadd.f32 0.0, %v411
        %v413 = vpop.f32.mrf.mxu0
        %v414 = vadd.f32 0.0, %v413
        %415 = vmatmul.bf16.gmra.mxu0 %v363
        %v416 = vpop.f32.mrf.mxu0
        %v417 = vadd.f32 0.0, %v416
        %v418 = vpop.f32.mrf.mxu0
        %v419 = vadd.f32 0.0, %v418
        %420 = vmatmul.bf16.gmra.mxu0 %v366
        %v421 = vpop.f32.mrf.mxu0
        %v422 = vadd.f32 0.0, %v421
        %v423 = vpop.f32.mrf.mxu0
        %v424 = vadd.f32 0.0, %v423
        %425 = vmatmul.bf16.gmra.mxu0 %v369
        %v426 = vpop.f32.mrf.mxu0
        %v427 = vadd.f32 0.0, %v426
        %v428 = vpop.f32.mrf.mxu0
        %v429 = vadd.f32 0.0, %v428
        %430 = vmatmul.bf16.gmra.mxu0 %v372
        %v431 = vpop.f32.mrf.mxu0
        %v432 = vadd.f32 0.0, %v431
        %v433 = vpop.f32.mrf.mxu0
        %v434 = vadd.f32 0.0, %v433
        %435 = vmatmul.bf16.gmra.mxu0 %v375
        %v436 = vpop.f32.mrf.mxu0
        %v437 = vadd.f32 0.0, %v436
        %v438 = vpop.f32.mrf.mxu0
        %v439 = vadd.f32 0.0, %v438
        %440 = vdwg.mxu0
        %441 = vmatpush.bf16.msra.mxu0 0
        %442 = vmatpush.bf16.msra.mxu0 0
        %443 = vmatpush.bf16.msra.mxu0 0
        %444 = vmatpush.bf16.msra.mxu0 0
        %445 = vmatpush.bf16.msra.mxu0 0
        %446 = vmatpush.bf16.msra.mxu0 0
        %447 = vmatpush.bf16.msra.mxu0 0
        %448 = vmatpush.bf16.msra.mxu0 %v382
        %449 = vmatmul.bf16.gmra.mxu0 %v351
        %v450 = vpop.f32.mrf.mxu0
        %v451 = vadd.f32 0.0, %v450
        %v452 = vpop.f32.mrf.mxu0
        %v453 = vadd.f32 0.0, %v452
        %454 = vmatmul.bf16.gmra.mxu0 %v354
        %v455 = vpop.f32.mrf.mxu0
        %v456 = vadd.f32 0.0, %v455
        %v457 = vpop.f32.mrf.mxu0
        %v458 = vadd.f32 0.0, %v457
        %459 = vmatmul.bf16.gmra.mxu0 %v357
        %v460 = vpop.f32.mrf.mxu0
        %v461 = vadd.f32 0.0, %v460
        %v462 = vpop.f32.mrf.mxu0
        %v463 = vadd.f32 0.0, %v462
        %464 = vmatmul.bf16.gmra.mxu0 %v360
        %v465 = vpop.f32.mrf.mxu0
        %v466 = vadd.f32 0.0, %v465
        %v467 = vpop.f32.mrf.mxu0
        %v468 = vadd.f32 0.0, %v467
        %469 = vmatmul.bf16.gmra.mxu0 %v363
        %v470 = vpop.f32.mrf.mxu0
        %v471 = vadd.f32 0.0, %v470
        %v472 = vpop.f32.mrf.mxu0
        %v473 = vadd.f32 0.0, %v472
        %474 = vmatmul.bf16.gmra.mxu0 %v366
        %v475 = vpop.f32.mrf.mxu0
        %v476 = vadd.f32 0.0, %v475
        %v477 = vpop.f32.mrf.mxu0
        %v478 = vadd.f32 0.0, %v477
        %479 = vmatmul.bf16.gmra.mxu0 %v369
        %v480 = vpop.f32.mrf.mxu0
        %v481 = vadd.f32 0.0, %v480
        %v482 = vpop.f32.mrf.mxu0
        %v483 = vadd.f32 0.0, %v482
        %484 = vmatmul.bf16.gmra.mxu0 %v372
        %v485 = vpop.f32.mrf.mxu0
        %v486 = vadd.f32 0.0, %v485
        %v487 = vpop.f32.mrf.mxu0
        %v488 = vadd.f32 0.0, %v487
        %489 = vmatmul.bf16.gmra.mxu0 %v375
        %v490 = vpop.f32.mrf.mxu0
        %v491 = vadd.f32 0.0, %v490
        %v492 = vpop.f32.mrf.mxu0
        %v493 = vadd.f32 0.0, %v492
        %494 = vdwg.mxu0
        %495 = vmatpush.bf16.msra.mxu0 0
        %496 = vmatpush.bf16.msra.mxu0 0
        %497 = vmatpush.bf16.msra.mxu0 0
        %498 = vmatpush.bf16.msra.mxu0 0
        %499 = vmatpush.bf16.msra.mxu0 0
        %500 = vmatpush.bf16.msra.mxu0 0
        %501 = vmatpush.bf16.msra.mxu0 0
        %502 = vmatpush.bf16.msra.mxu0 %v385
        %503 = vmatmul.bf16.gmra.mxu0 %v351
        %v504 = vpop.f32.mrf.mxu0
        %v505 = vadd.f32 0.0, %v504
        %v506 = vpop.f32.mrf.mxu0
        %v507 = vadd.f32 0.0, %v506
        %508 = vmatmul.bf16.gmra.mxu0 %v354
        %v509 = vpop.f32.mrf.mxu0
        %v510 = vadd.f32 0.0, %v509
        %v511 = vpop.f32.mrf.mxu0
        %v512 = vadd.f32 0.0, %v511
        %513 = vmatmul.bf16.gmra.mxu0 %v357
        %v514 = vpop.f32.mrf.mxu0
        %v515 = vadd.f32 0.0, %v514
        %v516 = vpop.f32.mrf.mxu0
        %v517 = vadd.f32 0.0, %v516
        %518 = vmatmul.bf16.gmra.mxu0 %v360
        %v519 = vpop.f32.mrf.mxu0
        %v520 = vadd.f32 0.0, %v519
        %v521 = vpop.f32.mrf.mxu0
        %v522 = vadd.f32 0.0, %v521
        %523 = vmatmul.bf16.gmra.mxu0 %v363
        %v524 = vpop.f32.mrf.mxu0
        %v525 = vadd.f32 0.0, %v524
        %v526 = vpop.f32.mrf.mxu0
        %v527 = vadd.f32 0.0, %v526
        %528 = vmatmul.bf16.gmra.mxu0 %v366
        %v529 = vpop.f32.mrf.mxu0
        %v530 = vadd.f32 0.0, %v529
        %v531 = vpop.f32.mrf.mxu0
        %v532 = vadd.f32 0.0, %v531
        %533 = vmatmul.bf16.gmra.mxu0 %v369
        %v534 = vpop.f32.mrf.mxu0
        %v535 = vadd.f32 0.0, %v534
        %v536 = vpop.f32.mrf.mxu0
        %v537 = vadd.f32 0.0, %v536
        %538 = vmatmul.bf16.gmra.mxu0 %v372
        %v539 = vpop.f32.mrf.mxu0
        %v540 = vadd.f32 0.0, %v539
        %v541 = vpop.f32.mrf.mxu0
        %v542 = vadd.f32 0.0, %v541
        %543 = vmatmul.bf16.gmra.mxu0 %v375
        %v544 = vpop.f32.mrf.mxu0
        %v545 = vadd.f32 0.0, %v544
        %v546 = vpop.f32.mrf.mxu0
        %v547 = vadd.f32 0.0, %v546
        %548 = vdwg.mxu0
        %v549 = vrot.slane %v451, 1
        %v550 = vrot.slane %v453, 1
        %v551 = vrot.slane %v456, 1
        %v552 = vrot.slane %v458, 1
        %v553 = vrot.slane %v461, 1
        %v554 = vrot.slane %v463, 1
        %v555 = vrot.slane %v466, 1
        %v556 = vrot.slane %v468, 1
        %v557 = vrot.slane %v471, 1
        %v558 = vrot.slane %v473, 1
        %v559 = vrot.slane %v476, 1
        %v560 = vrot.slane %v478, 1
        %v561 = vrot.slane %v481, 1
        %v562 = vrot.slane %v483, 1
        %v563 = vrot.slane %v486, 1
        %v564 = vrot.slane %v488, 1
        %v565 = vrot.slane %v491, 1
        %v566 = vrot.slane %v493, 1
        %v567 = vlaneseq
        %v568 = vshrl.u32 %v567, 7
        %vm569 = vcmp.lt.s32.totalorder %v568, 7
        %v570 = vsel %vm569, %v565, %v566
        %v571 = vsel %vm569, %v564, %v565
        %v572 = vsel %vm569, %v563, %v564
        %v573 = vsel %vm569, %v562, %v563
        %v574 = vsel %vm569, %v561, %v562
        %v575 = vsel %vm569, %v560, %v561
        %v576 = vsel %vm569, %v559, %v560
        %v577 = vsel %vm569, %v558, %v559
        %v578 = vsel %vm569, %v557, %v558
        %v579 = vsel %vm569, %v556, %v557
        %v580 = vsel %vm569, %v555, %v556
        %v581 = vsel %vm569, %v554, %v555
        %v582 = vsel %vm569, %v553, %v554
        %v583 = vsel %vm569, %v552, %v553
        %v584 = vsel %vm569, %v551, %v552
        %v585 = vsel %vm569, %v550, %v551
        %v586 = vsel %vm569, %v549, %v550
        %v587 = vsel %vm569, %v566, %v549
        %v588 = vadd.f32 %v397, %v586
        %v589 = vadd.f32 %v399, %v585
        %v590 = vadd.f32 %v402, %v584
        %v591 = vadd.f32 %v404, %v583
        %v592 = vadd.f32 %v407, %v582
        %v593 = vadd.f32 %v409, %v581
        %v594 = vadd.f32 %v412, %v580
        %v595 = vadd.f32 %v414, %v579
        %v596 = vadd.f32 %v417, %v578
        %v597 = vadd.f32 %v419, %v577
        %v598 = vadd.f32 %v422, %v576
        %v599 = vadd.f32 %v424, %v575
        %v600 = vadd.f32 %v427, %v574
        %v601 = vadd.f32 %v429, %v573
        %v602 = vadd.f32 %v432, %v572
        %v603 = vadd.f32 %v434, %v571
        %v604 = vadd.f32 %v437, %v570
        %v605 = vadd.f32 %v439, %v587
        %v606 = vrot.slane %v505, 2
        %v607 = vrot.slane %v507, 2
        %v608 = vrot.slane %v510, 2
        %v609 = vrot.slane %v512, 2
        %v610 = vrot.slane %v515, 2
        %v611 = vrot.slane %v517, 2
        %v612 = vrot.slane %v520, 2
        %v613 = vrot.slane %v522, 2
        %v614 = vrot.slane %v525, 2
        %v615 = vrot.slane %v527, 2
        %v616 = vrot.slane %v530, 2
        %v617 = vrot.slane %v532, 2
        %v618 = vrot.slane %v535, 2
        %v619 = vrot.slane %v537, 2
        %v620 = vrot.slane %v540, 2
        %v621 = vrot.slane %v542, 2
        %v622 = vrot.slane %v545, 2
        %v623 = vrot.slane %v547, 2
        %vm624 = vcmp.lt.s32.totalorder %v568, 6
        %v625 = vsel %vm624, %v622, %v623
        %v626 = vsel %vm624, %v621, %v622
        %v627 = vsel %vm624, %v620, %v621
        %v628 = vsel %vm624, %v619, %v620
        %v629 = vsel %vm624, %v618, %v619
        %v630 = vsel %vm624, %v617, %v618
        %v631 = vsel %vm624, %v616, %v617
        %v632 = vsel %vm624, %v615, %v616
        %v633 = vsel %vm624, %v614, %v615
        %v634 = vsel %vm624, %v613, %v614
        %v635 = vsel %vm624, %v612, %v613
        %v636 = vsel %vm624, %v611, %v612
        %v637 = vsel %vm624, %v610, %v611
        %v638 = vsel %vm624, %v609, %v610
        %v639 = vsel %vm624, %v608, %v609
        %v640 = vsel %vm624, %v607, %v608
        %v641 = vsel %vm624, %v606, %v607
        %v642 = vsel %vm624, %v623, %v606
        %v643 = vadd.f32 %v588, %v641
        %v644 = vadd.f32 %v589, %v640
        %v645 = vadd.f32 %v590, %v639
        %v646 = vadd.f32 %v591, %v638
        %v647 = vadd.f32 %v592, %v637
        %v648 = vadd.f32 %v593, %v636
        %v649 = vadd.f32 %v594, %v635
        %v650 = vadd.f32 %v595, %v634
        %v651 = vadd.f32 %v596, %v633
        %v652 = vadd.f32 %v597, %v632
        %v653 = vadd.f32 %v598, %v631
        %v654 = vadd.f32 %v599, %v630
        %v655 = vadd.f32 %v600, %v629
        %v656 = vadd.f32 %v601, %v628
        %v657 = vadd.f32 %v602, %v627
        %v658 = vadd.f32 %v603, %v626
        %v659 = vadd.f32 %v604, %v625
        %v660 = vadd.f32 %v605, %v642
        %662 = vset.pattern.permute.xlu0 0
        %663 = vperm.xlu0 %662, %v273
        %v664 = vpop.permute.xlu0 %663
        %667 = vset.pattern.permute.xlu0 0
        %668 = vperm.xlu0 %667, %v274
        %v669 = vpop.permute.xlu0 %668
        %672 = vset.pattern.permute.xlu0 0
        %673 = vperm.xlu0 %672, %v275
        %v674 = vpop.permute.xlu0 %673
        %677 = vset.pattern.permute.xlu0 0
        %678 = vperm.xlu0 %677, %v276
        %v679 = vpop.permute.xlu0 %678
        %682 = vset.pattern.permute.xlu0 0
        %683 = vperm.xlu0 %682, %v277
        %v684 = vpop.permute.xlu0 %683
        %687 = vset.pattern.permute.xlu0 0
        %688 = vperm.xlu0 %687, %v278
        %v689 = vpop.permute.xlu0 %688
        %692 = vset.pattern.permute.xlu0 0
        %693 = vperm.xlu0 %692, %v279
        %v694 = vpop.permute.xlu0 %693
        %697 = vset.pattern.permute.xlu0 0
        %698 = vperm.xlu0 %697, %v280
        %v699 = vpop.permute.xlu0 %698
        %702 = vset.pattern.permute.xlu0 0
        %703 = vperm.xlu0 %702, %v281
        %v704 = vpop.permute.xlu0 %703
        %707 = vset.pattern.permute.xlu0 0
        %708 = vperm.xlu0 %707, %v282
        %v709 = vpop.permute.xlu0 %708
        %712 = vset.pattern.permute.xlu0 0
        %713 = vperm.xlu0 %712, %v283
        %v714 = vpop.permute.xlu0 %713
        %717 = vset.pattern.permute.xlu0 0
        %718 = vperm.xlu0 %717, %v284
        %v719 = vpop.permute.xlu0 %718
        %722 = vset.pattern.permute.xlu0 0
        %723 = vperm.xlu0 %722, %v285
        %v724 = vpop.permute.xlu0 %723
        %727 = vset.pattern.permute.xlu0 0
        %728 = vperm.xlu0 %727, %v286
        %v729 = vpop.permute.xlu0 %728
        %732 = vset.pattern.permute.xlu0 0
        %733 = vperm.xlu0 %732, %v287
        %v734 = vpop.permute.xlu0 %733
        %737 = vset.pattern.permute.xlu0 0
        %738 = vperm.xlu0 %737, %v288
        %v739 = vpop.permute.xlu0 %738
        %742 = vset.pattern.permute.xlu0 0
        %743 = vperm.xlu0 %742, %v289
        %v744 = vpop.permute.xlu0 %743
        %747 = vset.pattern.permute.xlu0 0
        %748 = vperm.xlu0 %747, %v290
        %v749 = vpop.permute.xlu0 %748
        %v751 = vmul.f32 %v643, %v664
        %v752 = vmul.f32 %v644, %v669
        %v753 = vmul.f32 %v645, %v674
        %v754 = vmul.f32 %v646, %v679
        %v755 = vmul.f32 %v647, %v684
        %v756 = vmul.f32 %v648, %v689
        %v757 = vmul.f32 %v649, %v694
        %v758 = vmul.f32 %v650, %v699
        %v759 = vmul.f32 %v651, %v704
        %v760 = vmul.f32 %v652, %v709
        %v761 = vmul.f32 %v653, %v714
        %v762 = vmul.f32 %v654, %v719
        %v763 = vmul.f32 %v655, %v724
        %v764 = vmul.f32 %v656, %v729
        %v765 = vmul.f32 %v657, %v734
        %v766 = vmul.f32 %v658, %v739
        %v767 = vmul.f32 %v659, %v744
        %v768 = vmul.f32 %v660, %v749
        %v769 = vpack.c.bf16 %v751, %v751
        %v770 = vpack.c.bf16 %v752, %v752
        %v771 = vpack.c.bf16 %v753, %v753
        %v772 = vpack.c.bf16 %v754, %v754
        %v773 = vpack.c.bf16 %v755, %v755
        %v774 = vpack.c.bf16 %v756, %v756
        %v775 = vpack.c.bf16 %v757, %v757
        %v776 = vpack.c.bf16 %v758, %v758
        %v777 = vpack.c.bf16 %v759, %v759
        %v778 = vpack.c.bf16 %v760, %v760
        %v779 = vpack.c.bf16 %v761, %v761
        %v780 = vpack.c.bf16 %v762, %v762
        %v781 = vpack.c.bf16 %v763, %v763
        %v782 = vpack.c.bf16 %v764, %v764
        %v783 = vpack.c.bf16 %v765, %v765
        %v784 = vpack.c.bf16 %v766, %v766
        %v785 = vpack.c.bf16 %v767, %v767
        %v786 = vpack.c.bf16 %v768, %v768
        %787 = vst [vmem:[%s226] sm:$0xf] %v769
        %788 = vst [vmem:[%s226 + $0x4] sm:$0xf] %v770
        %789 = vst [vmem:[%s226 + $0x8] sm:$0xf] %v771
        %790 = vst [vmem:[%s226 + $0xc] sm:$0xf] %v772
        %791 = vst [vmem:[%s226 + $0x10] sm:$0xf] %v773
        %792 = vst [vmem:[%s226 + $0x14] sm:$0xf] %v774
        %793 = vst [vmem:[%s226 + $0x18] sm:$0xf] %v775
        %794 = vst [vmem:[%s226 + $0x1c] sm:$0xf] %v776
        %795 = vst [vmem:[%s226 + $0x20] sm:$0xf] %v777
        %796 = vst [vmem:[%s226 + $0x24] sm:$0xf] %v778
        %797 = vst [vmem:[%s226 + $0x28] sm:$0xf] %v779
        %798 = vst [vmem:[%s226 + $0x2c] sm:$0xf] %v780
        %799 = vst [vmem:[%s226 + $0x30] sm:$0xf] %v781
        %800 = vst [vmem:[%s226 + $0x34] sm:$0xf] %v782
        %801 = vst [vmem:[%s226 + $0x38] sm:$0xf] %v783
        %802 = vst [vmem:[%s226 + $0x3c] sm:$0xf] %v784
        %803 = vst [vmem:[%s226 + $0x40] sm:$0xf] %v785
        %804 = vst [vmem:[%s226 + $0x44] sm:$0xf] %v786
        %v805 = vld [vmem:[#allocation4] sm:$0x1]
        %v806 = vadd.f32 %v751, %v752
        %v807 = vadd.f32 %v806, %v753
        %v808 = vadd.f32 %v807, %v754
        %v809 = vadd.f32 %v808, %v755
        %v810 = vadd.f32 %v809, %v756
        %v811 = vadd.f32 %v810, %v757
        %v812 = vadd.f32 %v811, %v758
        %v813 = vadd.f32 %v812, %v759
        %v814 = vadd.f32 %v813, %v760
        %v815 = vadd.f32 %v814, %v761
        %v816 = vadd.f32 %v815, %v762
        %v817 = vadd.f32 %v816, %v763
        %v818 = vadd.f32 %v817, %v764
        %v819 = vadd.f32 %v818, %v765
        %v820 = vadd.f32 %v819, %v766
        %v821 = vadd.f32 %v820, %v767
        %v822 = vadd.f32 %v821, %v768
        %v823 = vrot.slane %v822, 4
        %v824 = vadd.f32 %v822, %v823
        %v825 = vrot.slane %v824, 2
        %v826 = vadd.f32 %v824, %v825
        %v827 = vrot.slane %v826, 1
        %v828 = vadd.f32 %v826, %v827
        %v829 = vadd.f32 %v805, %v828
        %830 = vst [vmem:[#allocation4] sm:$0x1] %v829
        %v831 = vld [vmem:[#allocation6] sm:$0x1]
        %v832 = vmul.f32 %v751, %v751
        %v833 = vmul.f32 %v752, %v752
        %v834 = vmul.f32 %v753, %v753
        %v835 = vmul.f32 %v754, %v754
        %v836 = vmul.f32 %v755, %v755
        %v837 = vmul.f32 %v756, %v756
        %v838 = vmul.f32 %v757, %v757
        %v839 = vmul.f32 %v758, %v758
        %v840 = vmul.f32 %v759, %v759
        %v841 = vmul.f32 %v760, %v760
        %v842 = vmul.f32 %v761, %v761
        %v843 = vmul.f32 %v762, %v762
        %v844 = vmul.f32 %v763, %v763
        %v845 = vmul.f32 %v764, %v764
        %v846 = vmul.f32 %v765, %v765
        %v847 = vmul.f32 %v766, %v766
        %v848 = vmul.f32 %v767, %v767
        %v849 = vmul.f32 %v768, %v768
        %v850 = vadd.f32 %v832, %v833
        %v851 = vadd.f32 %v850, %v834
        %v852 = vadd.f32 %v851, %v835
        %v853 = vadd.f32 %v852, %v836
        %v854 = vadd.f32 %v853, %v837
        %v855 = vadd.f32 %v854, %v838
        %v856 = vadd.f32 %v855, %v839
        %v857 = vadd.f32 %v856, %v840
        %v858 = vadd.f32 %v857, %v841
        %v859 = vadd.f32 %v858, %v842
        %v860 = vadd.f32 %v859, %v843
        %v861 = vadd.f32 %v860, %v844
        %v862 = vadd.f32 %v861, %v845
        %v863 = vadd.f32 %v862, %v846
        %v864 = vadd.f32 %v863, %v847
        %v865 = vadd.f32 %v864, %v848
        %v866 = vadd.f32 %v865, %v849
        %v867 = vrot.slane %v866, 4
        %v868 = vadd.f32 %v866, %v867
        %v869 = vrot.slane %v868, 2
        %v870 = vadd.f32 %v868, %v869
        %v871 = vrot.slane %v870, 1
        %v872 = vadd.f32 %v870, %v871
        %v873 = vadd.f32 %v831, %v872
        %874 = vst [vmem:[#allocation6] sm:$0x1] %v873
        %s875 = sand.u32 %s102, 1
        %s876 = scalar_lea.sflag [#allocation3], %s875
        %s877 = sand.u32 %s102, 1
        %s878 = smul.addr %s877, 72
        %s879 = scalar_lea.vmem [#allocation2], %s878
        // Predicated region
        $region37: #{tpu_custom_call.1} parent=31 // pred_check
          %p880 = pneg %p112
        $region38: #{tpu_custom_call.1} parent=31 // pred_check_branch
          %882 = sbr.rel (%p880) target = $region40
        $region39: #{tpu_custom_call.1} parent=31 // pred_region
          %s883 = smul.u32 18, %s21
          %885 = vsyncadd %s876, 0
          %s886 = smul.addr %s883, 4
          %s887 = scalar_lea.hbm %s3, %s886
          %s888 = sshll.u32 %s879, 4
          %s889 = int_to_ptr.vmem [resolvable:$true] %s888
          %s890 = sshll.u32 %s887, 4
          %s891 = int_to_ptr.hbm [resolvable:$true] %s890
          %896 = dma.vmem_to_hbm [thread:$0]  %s889, 1152, %s891, %s876, 64, 64, 4
        $region40: #{tpu_custom_call.1} parent=31 // pred_fallthru
          _
        // Predicated region
        $region41: #{tpu_custom_call.1} parent=31 // pred_check
          %p897 = pneg %p133
        $region42: #{tpu_custom_call.1} parent=31 // pred_check_branch
          %899 = sbr.rel (%p897) target = $region44
        $region43: #{tpu_custom_call.1} parent=31 // pred_region
          %901 = vsyncadd [#allocation5], 0
          %s903 = sshll.u32 [#allocation4], 4
          %s904 = int_to_ptr.vmem [resolvable:$true] %s903
          %s905 = sshll.u32 %s4, 4
          %s906 = int_to_ptr.hbm [resolvable:$true] %s905
          %908 = dma.vmem_to_hbm [thread:$0]  %s904, 16, %s906, [#allocation5]
        $region44: #{tpu_custom_call.1} parent=31 // pred_fallthru
          _
        // Predicated region
        $region45: #{tpu_custom_call.1} parent=31 // pred_check
          %p909 = pneg %p154
        $region46: #{tpu_custom_call.1} parent=31 // pred_check_branch
          %911 = sbr.rel (%p909) target = $region48
        $region47: #{tpu_custom_call.1} parent=31 // pred_region
          %913 = vsyncadd [#allocation5], 0
          %s915 = sshll.u32 [#allocation6], 4
          %s916 = int_to_ptr.vmem [resolvable:$true] %s915
          %s917 = sshll.u32 %s5, 4
          %s918 = int_to_ptr.hbm [resolvable:$true] %s917
          %920 = dma.vmem_to_hbm [thread:$0]  %s916, 16, %s918, [#allocation5]
        $region48: #{tpu_custom_call.1} parent=31 // pred_fallthru
          _
        // Predicated region
        $region49: #{tpu_custom_call.1} parent=31 // pred_check
          %p921 = pneg %p133
        $region50: #{tpu_custom_call.1} parent=31 // pred_check_branch
          %923 = sbr.rel (%p921) target = $region52
        $region51: #{tpu_custom_call.1} parent=31 // pred_region
          %925 = dma.done [#allocation5], 16
        $region52: #{tpu_custom_call.1} parent=31 // pred_fallthru
          _
        // Predicated region
        $region53: #{tpu_custom_call.1} parent=31 // pred_check
          %p926 = pneg %p154
        $region54: #{tpu_custom_call.1} parent=31 // pred_check_branch
          %928 = sbr.rel (%p926) target = $region56
        $region55: #{tpu_custom_call.1} parent=31 // pred_region
          %930 = dma.done [#allocation5], 16
        $region56: #{tpu_custom_call.1} parent=31 // pred_fallthru
          _
      $region32: #{tpu_custom_call.1} parent=5 // pred_fallthru
        _
      %p931 = scmp.le.s32.totalorder 2, %s16
      // Predicated region
      $region57: #{tpu_custom_call.1} parent=5 // pred_check
        %p932 = pneg %p931
      $region58: #{tpu_custom_call.1} parent=5 // pred_check_branch
        %934 = sbr.rel (%p932) target = $region60
      $region59: #{tpu_custom_call.1} parent=5 // pred_region
        %s935 = ssub.s32 %s16, 2
        // Predicated region
        $region61: #{tpu_custom_call.1} parent=59 // pred_check
          %p936 = pneg %p118
        $region62: #{tpu_custom_call.1} parent=59 // pred_check_branch
          %938 = sbr.rel (%p936) target = $region64
        $region63: #{tpu_custom_call.1} parent=59 // pred_region
          %s939 = sand.u32 %s103, 1
          %s940 = scalar_lea.sflag [#allocation3], %s939
          %s941 = sand.u32 %s103, 1
          %s942 = smul.addr %s941, 72
          %s943 = scalar_lea.vmem [#allocation2], %s942
          %945 = dma.done %s940, 1152
        $region64: #{tpu_custom_call.1} parent=59 // pred_fallthru
          _
      $region60: #{tpu_custom_call.1} parent=5 // pred_fallthru
        _
    $region6: #{tpu_custom_call.1} parent=1 // loop_footer
      %s20 = sadd.s32 1, %s16
    $region7: #{tpu_custom_call.1} parent=1 // loop_footer_branch
      %15 = sbr.rel target = $region3
    $region8: #{tpu_custom_call.1} parent=1 // loop_exit
      _
    %946 = vsyncpa [#allocation3], 1
    %s947 = scalar_lea.sflag [#allocation3], 1
    %948 = vsyncpa %s947, 1
    %949 = vsyncpa [#allocation5], 1

</llo_original>
